<compile_context>
chip_gen: v7x
topology: tpu7x:2x2x1
jax: 0.10.0
libtpu: 0.0.40
codegen_flags: <defaults>
</compile_context>

<pallas_src>
import functools

import jax
import jax.numpy as jnp
from jax.experimental import pallas as pl
from jax.experimental.pallas import tpu as pltpu

_MIB = 1 << 20


def _round_up(v, m):
    return ((v + m - 1) // m) * m


def _vmem_capacity_bytes():
    """Physical per-core VMEM; conservative 64 MiB (v7x) fallback."""
    try:
        info = pltpu.get_tpu_info()
        for name in ("vmem_capacity_bytes", "vmem_size_bytes", "vmem_bytes"):
            cap = getattr(info, name, None)
            if cap:
                return int(cap)
    except Exception:  # pragma: no cover - query unsupported on this runtime
        pass
    return 64 * _MIB


# --------------------------------------------------------------------------
# Kernels
# --------------------------------------------------------------------------
def _ffn_kernel_fused(x_ref, w1_ref, b1_ref, w2_ref, b2_ref, o_ref, *,
                      compute_dtype):
    """Single hidden tile (tk == d_hid): no accumulator round-trip."""
    x = x_ref[...].astype(compute_dtype)
    h = jnp.dot(x, w1_ref[...].astype(compute_dtype),
                preferred_element_type=jnp.float32)
    h = jnp.maximum(h + b1_ref[...].astype(jnp.float32), 0.0)
    out = jnp.dot(h.astype(compute_dtype), w2_ref[...].astype(compute_dtype),
                  preferred_element_type=jnp.float32)
    o_ref[...] = (out + b2_ref[...].astype(jnp.float32)).astype(o_ref.dtype)


def _ffn_kernel_streamed(x_ref, w1_ref, b1_ref, w2_ref, b2_ref, o_ref,
                         acc_ref, *, compute_dtype, d_hid, tk):
    """Hidden dim streamed in tk-wide slices; f32 accumulator in VMEM."""
    k = pl.program_id(1)

    @pl.when(k == 0)
    def _():
        acc_ref[...] = jnp.zeros_like(acc_ref)

    x = x_ref[...].astype(compute_dtype)
    h = jnp.dot(x, w1_ref[...].astype(compute_dtype),
                preferred_element_type=jnp.float32)
    h = jnp.maximum(h + b1_ref[...].astype(jnp.float32), 0.0)

    w2 = w2_ref[...].astype(compute_dtype)
    if d_hid % tk != 0:
        # Partial last hidden tile: zero OOB columns of h AFTER bias+ReLU
        # (relu(0 + b1) != 0) and zero the matching OOB rows of W2 so a NaN
        # garbage bit pattern can never reach the accumulator (0 * NaN = NaN).
        rem = d_hid - k * tk  # >= tk on all but the last tile -> mask no-op
        col = jax.lax.broadcasted_iota(jnp.int32, h.shape, 1)
        h = jnp.where(col < rem, h, 0.0)
        row = jax.lax.broadcasted_iota(jnp.int32, w2.shape, 0)
        w2 = jnp.where(row < rem, w2, 0)

    acc_ref[...] += jnp.dot(h.astype(compute_dtype), w2,
                            preferred_element_type=jnp.float32)

    @pl.when(k == pl.num_programs(1) - 1)
    def _():
        o_ref[...] = (acc_ref[...]
                      + b2_ref[...].astype(jnp.float32)).astype(o_ref.dtype)


# --------------------------------------------------------------------------
# Tile selection
# --------------------------------------------------------------------------
def _pick_tiles(rows, d_in, d_hid, d_out, x_isz, w_isz, out_isz, budget,
                row_tile, hid_tile):
    """Pick (tm, tk) so double-buffered tiles fit the VMEM budget."""
    # ---- row tile: target 1024 rows (keeps weight re-streaming amortized
    # well past the v6e ~650 flops/byte crossover) ----
    if rows <= 8:
        tm = rows                                   # full-dim block
    else:
        tm = row_tile if row_tile is not None else 1024
        tm = min(_round_up(tm, 8), _round_up(rows, 8))

    def fixed_bytes(tm_):
        # double-buffered x & out tiles + resident f32 accumulator
        return (2 * tm_ * d_in * x_isz
                + 2 * tm_ * d_out * out_isz
                + tm_ * d_out * 4)

    while tm > 64 and fixed_bytes(tm) > (budget * 11) // 20:   # ~55% of budget
        tm = max(64, _round_up(tm // 2, 8))

    # >= 2 row tiles so the "parallel" axis can shard across both v7x TCs.
    if rows > 8 and pl.cdiv(rows, tm) == 1:
        tm = max(8, _round_up(pl.cdiv(rows, 2), 8))

    # ---- hidden tile ----
    if hid_tile is not None:
        tk = min(hid_tile, d_hid)
        if tk < d_hid:
            assert tk % 128 == 0, "hid_tile must be a multiple of 128"
        return tm, tk

    per_col = 2 * (d_in + d_out + 1) * w_isz   # dbl-buffered W1 col + W2 row + b1
    max_tk = max(128, (budget - fixed_bytes(tm)) // per_col)
    if d_hid <= max_tk:
        return tm, d_hid                       # weights fully resident, 1 k-step

    cand = (max_tk // 256) * 256               # feed the 256x256 MXUs (v6e/v7x)
    if cand < 256:
        cand = max(128, (max_tk // 128) * 128)  # v5e-friendly fallback
    return tm, min(cand, d_hid)


# --------------------------------------------------------------------------
# Wrapper
# --------------------------------------------------------------------------
@functools.partial(jax.jit,
                   static_argnames=("row_tile", "hid_tile", "compute_dtype"))
def position_wise_ffn(x, w1, b1, w2, b2, *, row_tile=None, hid_tile=None,
                      compute_dtype=jnp.bfloat16):
    """dense2(relu(dense1(x))) applied to the last axis of x.

    x:  (batch, seq, d_in)
    w1: (d_in, d_hid), b1: (d_hid,)   -- dense1 stored (in, out), i.e. W_pt.T
    w2: (d_hid, d_out), b2: (d_out,)  -- dense2 stored (in, out)
    Weights/biases are used in their stored dtype (prepare them, e.g. bf16,
    once outside the per-call path); tiles are cast in-kernel.
    """
    batch, seq, d_in = x.shape
    d_hid = w1.shape[1]
    d_out = w2.shape[1]
    rows = batch * seq
    out_dtype = x.dtype

    # Lane-dense output: pad the output dim to a multiple of 128 so stores are
    # full vst (not masked vst.msk).  Padded W2/b2 columns are zero and the
    # extra output columns are sliced away below.
    d_out_pad = _round_up(d_out, 128)
    if d_out_pad != d_out:
        w2 = jnp.pad(w2, ((0, 0), (0, d_out_pad - d_out)))
        b2 = jnp.pad(b2, (0, d_out_pad - d_out))

    x_isz = jnp.dtype(x.dtype).itemsize
    w_isz = jnp.dtype(w1.dtype).itemsize
    out_isz = jnp.dtype(out_dtype).itemsize
    b1_isz = jnp.dtype(b1.dtype).itemsize
    b2_isz = jnp.dtype(b2.dtype).itemsize

    cap = _vmem_capacity_bytes()
    budget = (cap * 13) // 20            # ~65% of physical VMEM as working set

    tm, tk = _pick_tiles(rows, d_in, d_hid, d_out_pad, x_isz, w_isz, out_isz,
                         budget, row_tile, hid_tile)
    n_row = pl.cdiv(rows, tm)
    nk = pl.cdiv(d_hid, tk)

    x2d = x.reshape(rows, d_in)          # layout-preserving, no copy / no cast
    b1r = b1.reshape(1, d_hid)
    b2r = b2.reshape(1, d_out_pad)

    # Per-step VMEM footprint (double-buffered tiles + f32 accumulator) drives
    # an explicit scoped-VMEM limit, capped at 80% of physical capacity
    # (~51 MiB on v7x, ~102 MiB on v5e/v6e) to keep compiler headroom.
    est = (2 * tm * d_in * x_isz + 2 * tm * d_out_pad * out_isz
           + tm * d_out_pad * 4
           + 2 * (d_in * tk + tk * d_out_pad) * w_isz
           + 2 * tk * b1_isz + 2 * d_out_pad * b2_isz)
    vmem_limit = int(min(max(est * 3 // 2, 16 * _MIB), (cap * 4) // 5))

    cost = pl.CostEstimate(
        flops=2 * rows * d_in * d_hid + 2 * rows * d_hid * d_out_pad,
        transcendentals=0,
        bytes_accessed=(rows * d_in * x_isz
                        + n_row * (w1.size + w2.size) * w_isz  # re-streamed/tile
                        + b1.size * b1_isz + b2r.size * b2_isz
                        + rows * d_out_pad * out_isz),
    )

    if nk == 1:
        # Hidden dim fully resident: write straight to o_ref (no acc scratch).
        kernel = functools.partial(_ffn_kernel_fused,
                                   compute_dtype=compute_dtype)
        grid_spec = pltpu.PrefetchScalarGridSpec(
            num_scalar_prefetch=0,
            grid=(n_row,),
            in_specs=[
                pl.BlockSpec((tm, d_in), lambda i: (i, 0)),        # X row tile
                pl.BlockSpec((d_in, d_hid), lambda i: (0, 0)),     # W1 resident
                pl.BlockSpec((1, d_hid), lambda i: (0, 0)),        # b1 resident
                pl.BlockSpec((d_hid, d_out_pad), lambda i: (0, 0)),  # W2 resident
                pl.BlockSpec((1, d_out_pad), lambda i: (0, 0)),    # b2 resident
            ],
            out_specs=pl.BlockSpec((tm, d_out_pad), lambda i: (i, 0)),
        )
        dims = ("parallel",)
    else:
        kernel = functools.partial(_ffn_kernel_streamed,
                                   compute_dtype=compute_dtype,
                                   d_hid=d_hid, tk=tk)
        grid_spec = pltpu.PrefetchScalarGridSpec(
            num_scalar_prefetch=0,
            grid=(n_row, nk),
            in_specs=[
                pl.BlockSpec((tm, d_in), lambda i, k: (i, 0)),     # X row tile
                pl.BlockSpec((d_in, tk), lambda i, k: (0, k)),     # W1 hid tile
                pl.BlockSpec((1, tk), lambda i, k: (0, k)),        # b1 hid tile
                pl.BlockSpec((tk, d_out_pad), lambda i, k: (k, 0)),  # W2 hid tile
                pl.BlockSpec((1, d_out_pad), lambda i, k: (0, 0)),  # b2 resident
            ],
            out_specs=pl.BlockSpec((tm, d_out_pad), lambda i, k: (i, 0)),
            scratch_shapes=[pltpu.VMEM((tm, d_out_pad), jnp.float32)],
        )
        dims = ("parallel", "arbitrary")

    out2d = pl.pallas_call(
        kernel,
        out_shape=jax.ShapeDtypeStruct((rows, d_out_pad), out_dtype),
        grid_spec=grid_spec,
        compiler_params=pltpu.CompilerParams(
            dimension_semantics=dims,
            vmem_limit_bytes=vmem_limit,
        ),
        cost_estimate=cost,
    )(x2d, w1, b1r, w2, b2r)

    if d_out_pad != d_out:
        out2d = out2d[:, :d_out]
    return out2d.reshape(batch, seq, d_out)


# --------------------------------------------------------------------------
# Synthetic parameters + self-test
# --------------------------------------------------------------------------
def init_params(key, d_in, d_hid, d_out, dtype=jnp.float32):
    """Synthetic init mirroring nn.Linear parameter shapes.

    PyTorch stores Linear weight as (out, in); we keep (in, out) so the kernel
    does x @ W directly (mathematically identical to x @ W_pt.T)."""
    k1, k2, k3, k4 = jax.random.split(key, 4)
    bound1 = 1.0 / (d_in ** 0.5)
    bound2 = 1.0 / (d_hid ** 0.5)
    w1 = jax.random.uniform(k1, (d_in, d_hid), dtype, -bound1, bound1)
    b1 = jax.random.uniform(k2, (d_hid,), dtype, -bound1, bound1)
    w2 = jax.random.uniform(k3, (d_hid, d_out), dtype, -bound2, bound2)
    b2 = jax.random.uniform(k4, (d_out,), dtype, -bound2, bound2)
    return w1, b1, w2, b2


if __name__ == "__main__":
    # Small shapes consistent with the module: (batch, seq, ffn_num_input).
    batch, seq = 2, 8
    ffn_num_input, ffn_num_hiddens, ffn_num_outputs = 32, 64, 32

    key = jax.random.PRNGKey(0)
    kx, kp = jax.random.split(key)
    x = jax.random.normal(kx, (batch, seq, ffn_num_input), jnp.float32)
    w1, b1, w2, b2 = init_params(kp, ffn_num_input, ffn_num_hiddens,
                                 ffn_num_outputs)

    # One-time parameter preparation OUTSIDE the per-call path: weights to
    # bf16 (MXU input dtype); biases stay f32 (epilogue dtype).
    w1_p = w1.astype(jnp.bfloat16)
    w2_p = w2.astype(jnp.bfloat16)

    out = position_wise_ffn(x, w1_p, b1, w2_p, b2)
    out = jax.block_until_ready(out)

    # Reference mirrors the kernel's bf16-matmul / f32-accumulate math
    # (a PyTorch fp32 reference would match to ~bf16 precision).
    xb = x.astype(jnp.bfloat16).astype(jnp.float32)
    w1f = w1_p.astype(jnp.float32)
    w2f = w2_p.astype(jnp.float32)
    h = jnp.maximum(xb @ w1f + b1, 0.0).astype(jnp.bfloat16).astype(jnp.float32)
    ref = h @ w2f + b2

    assert out.shape == (batch, seq, ffn_num_outputs)
    assert out.dtype == x.dtype
    assert jnp.allclose(out, ref, atol=1e-2, rtol=1e-2), (
        float(jnp.max(jnp.abs(out - ref))))

    print("KERNEL_OK")
</pallas_src>

<mosaic_0001>
module attributes {stable_mosaic.version = 11 : i64} {
  func.func @_ffn_kernel_fused(%arg0: i32, %arg1: memref<8x32xf32, #tpu.memory_space<vmem>>, %arg2: memref<32x64xbf16, #tpu.memory_space<vmem>>, %arg3: memref<1x64xf32, #tpu.memory_space<vmem>>, %arg4: memref<64x128xbf16, #tpu.memory_space<vmem>>, %arg5: memref<1x128xf32, #tpu.memory_space<vmem>>, %arg6: memref<8x128xf32, #tpu.memory_space<vmem>>) attributes {dimension_semantics = [#tpu.dimension_semantics<parallel>], iteration_bounds = array<i64: 2>, scalar_prefetch = 0 : i64, scratch_operands = 0 : i64, tpu.core_type = #tpu.core_type<tc>, window_params = [{transform_indices = @transform_0, window_bounds = array<i64: 8, 32>}, {pipeline_mode = #tpu.pipeline_mode<synchronous>, transform_indices = @transform_1, window_bounds = array<i64: 32, 64>}, {pipeline_mode = #tpu.pipeline_mode<synchronous>, transform_indices = @transform_2, window_bounds = array<i64: 1, 64>}, {pipeline_mode = #tpu.pipeline_mode<synchronous>, transform_indices = @transform_3, window_bounds = array<i64: 64, 128>}, {pipeline_mode = #tpu.pipeline_mode<synchronous>, transform_indices = @transform_4, window_bounds = array<i64: 1, 128>}, {transform_indices = @transform_5, window_bounds = array<i64: 8, 128>}]} {
    %c0 = arith.constant 0 : index
    %c0_0 = arith.constant 0 : index
    %0 = vector.load %arg1[%c0, %c0_0] : memref<8x32xf32, #tpu.memory_space<vmem>>, vector<8x32xf32>
    %1 = arith.truncf %0 : vector<8x32xf32> to vector<8x32xbf16>
    %c0_1 = arith.constant 0 : index
    %c0_2 = arith.constant 0 : index
    %2 = vector.load %arg2[%c0_1, %c0_2] : memref<32x64xbf16, #tpu.memory_space<vmem>>, vector<32x64xbf16>
    %cst = arith.constant dense<0.000000e+00> : vector<8x64xf32>
    %3 = tpu.matmul %1, %2, %cst {dimension_numbers = #tpu.dot_dimension_numbers<[1], [0], [0], [1], [0, 0, 1, 1], [], []>} : vector<8x32xbf16>, vector<32x64xbf16>, vector<8x64xf32> -> vector<8x64xf32>
    %c0_3 = arith.constant 0 : index
    %c0_4 = arith.constant 0 : index
    %4 = vector.load %arg3[%c0_3, %c0_4] : memref<1x64xf32, #tpu.memory_space<vmem>>, vector<1x64xf32>
    %5 = vector.broadcast %4 : vector<1x64xf32> to vector<8x64xf32>
    %6 = arith.addf %3, %5 : vector<8x64xf32>
    %cst_5 = arith.constant 0.000000e+00 : f32
    %7 = vector.broadcast %cst_5 : f32 to vector<8x64xf32>
    %8 = arith.maximumf %6, %7 : vector<8x64xf32>
    %9 = arith.truncf %8 : vector<8x64xf32> to vector<8x64xbf16>
    %c0_6 = arith.constant 0 : index
    %c0_7 = arith.constant 0 : index
    %10 = vector.load %arg4[%c0_6, %c0_7] : memref<64x128xbf16, #tpu.memory_space<vmem>>, vector<64x128xbf16>
    %cst_8 = arith.constant dense<0.000000e+00> : vector<8x128xf32>
    %11 = tpu.matmul %9, %10, %cst_8 {dimension_numbers = #tpu.dot_dimension_numbers<[1], [0], [0], [1], [0, 0, 1, 1], [], []>} : vector<8x64xbf16>, vector<64x128xbf16>, vector<8x128xf32> -> vector<8x128xf32>
    %c0_9 = arith.constant 0 : index
    %c0_10 = arith.constant 0 : index
    %12 = vector.load %arg5[%c0_9, %c0_10] : memref<1x128xf32, #tpu.memory_space<vmem>>, vector<1x128xf32>
    %13 = vector.broadcast %12 : vector<1x128xf32> to vector<8x128xf32>
    %14 = arith.addf %11, %13 : vector<8x128xf32>
    %c0_11 = arith.constant 0 : index
    %c0_12 = arith.constant 0 : index
    %15 = vector.load %arg6[%c0_11, %c0_12] : memref<8x128xf32, #tpu.memory_space<vmem>>, vector<8x128xf32>
    tpu.vector_store %arg6[%c0_11, %c0_12], %14 {strides = array<i32>} : memref<8x128xf32, #tpu.memory_space<vmem>>, vector<8x128xf32>,
    return
  }
  func.func @transform_0(%arg0: i32) -> (i32, i32) {
    %c0_i32 = arith.constant 0 : i32
    %c0_i32_0 = arith.constant 0 : i32
    return %arg0, %c0_i32 : i32, i32
  }
  func.func @transform_1(%arg0: i32) -> (i32, i32) {
    %c0_i32 = arith.constant 0 : i32
    %c0_i32_0 = arith.constant 0 : i32
    %c0_i32_1 = arith.constant 0 : i32
    return %c0_i32, %c0_i32_0 : i32, i32
  }
  func.func @transform_2(%arg0: i32) -> (i32, i32) {
    %c0_i32 = arith.constant 0 : i32
    %c0_i32_0 = arith.constant 0 : i32
    %c0_i32_1 = arith.constant 0 : i32
    return %c0_i32, %c0_i32_0 : i32, i32
  }
  func.func @transform_3(%arg0: i32) -> (i32, i32) {
    %c0_i32 = arith.constant 0 : i32
    %c0_i32_0 = arith.constant 0 : i32
    %c0_i32_1 = arith.constant 0 : i32
    return %c0_i32, %c0_i32_0 : i32, i32
  }
  func.func @transform_4(%arg0: i32) -> (i32, i32) {
    %c0_i32 = arith.constant 0 : i32
    %c0_i32_0 = arith.constant 0 : i32
    %c0_i32_1 = arith.constant 0 : i32
    return %c0_i32, %c0_i32_0 : i32, i32
  }
  func.func @transform_5(%arg0: i32) -> (i32, i32) {
    %c0_i32 = arith.constant 0 : i32
    %c0_i32_0 = arith.constant 0 : i32
    return %arg0, %c0_i32 : i32, i32
  }
}

</mosaic_0001>

<llo_original>
// kernel: position_wise_ffn.1
$region0: #{position_wise_ffn.1}
  #allocation0 [shape = 'u32[]', space=smem, size = 0x4, offset = 0x4, fixed_abs, tag = 'smem constant byte address 0x4 - core index']
  #allocation1 [shape = 'u32[144,128]{1,0:T(1,128)}', space=vmem, size = 0x12000, scoped, tag = 'internal scratch']
  %s0 = inlined_call_operand.vmem [shape: f32[16,32], index: 0, kind: input, shape index: {}]
  %s1 = inlined_call_operand.vmem [shape: bf16[32,64], index: 1, kind: input, shape index: {}]
  %s2 = inlined_call_operand.vmem [shape: f32[1,64], index: 2, kind: input, shape index: {}]
  %s3 = inlined_call_operand.vmem [shape: bf16[64,128], index: 3, kind: input, shape index: {}]
  %s4 = inlined_call_operand.vmem [shape: f32[1,128], index: 4, kind: input, shape index: {}]
  %s5 = inlined_call_operand.vmem [shape: f32[16,128], index: 5, kind: output, shape index: {}]
  %s6 = sld [smem:[#allocation0]]
  $region53: #{position_wise_ffn.1} parent=0
    _
  %s8 = ssub.s32 1, %s6
  %s9 = scalar_select 0, %s8, %s6
  loop: start=0, step=1, limit=4
  $region2: #{position_wise_ffn.1} parent=0 // loop_pre_header
    _
  $region3: #{position_wise_ffn.1} parent=0 // loop_header
    %s11 = sphi 0, %s15
    %p12 = scmp.ge.s32.totalorder %s11, 4
    %s21 = sphi 0, %s23
    %s24 = sphi 0, %s21
    %s25 = sphi 0, %s24
    %s41 = sphi 0, %s25
    %s45 = sphi 0, %s45
    %s47 = sphi 0, %s45
    %s48 = sphi 0, %s47
    %s62 = sphi 0, %s48
    %s66 = sphi 0, %s66
    %s68 = sphi 0, %s66
    %s69 = sphi 0, %s68
    %s83 = sphi 0, %s69
    %s87 = sphi 0, %s87
    %s89 = sphi 0, %s87
    %s90 = sphi 0, %s89
    %s104 = sphi 0, %s90
    %s108 = sphi 0, %s108
    %s110 = sphi 0, %s108
    %s111 = sphi 0, %s110
    %s125 = sphi 0, %s111
    %s131 = sphi 0, %s133
    %s134 = sphi 0, %s131
    %s135 = sphi 0, %s134
    %s151 = sphi 0, %s135
  $region4: #{position_wise_ffn.1} parent=0 // loop_header_branch
    %14 = sbr.rel (%p12) target = $region8
  $region5: #{position_wise_ffn.1} parent=0 // loop_body
    %s16 = ssub.s32 %s11, 1
    %s17 = ssub.s32 %s11, 2
    %s18 = sadd.s32 %s11, 1
    %s19 = ssub.s32 %s11, %s18
    %p20 = scmp.eq.s32.totalorder %s19, 0
    %s22 = sadd.s32 %s21, 1
    %s23 = scalar_select %p20, %s21, %s22
    %p26 = pneg %p20
    %p27 = scmp.eq.s32.totalorder %s11, 1
    %p28 = por %p26, %p27
    %p29 = scmp.ne.s32.totalorder %s21, %s24
    %p30 = scmp.eq.s32.totalorder %s11, 0
    %p31 = por %p29, %p30
    %p32 = scmp.ne.s32.totalorder %s21, %s24
    %p33 = scmp.eq.s32.totalorder %s16, 1
    %p34 = por %p32, %p33
    %p35 = scmp.ne.s32.totalorder %s24, %s25
    %p36 = scmp.eq.s32.totalorder %s16, 0
    %p37 = por %p35, %p36
    %p38 = scmp.ne.s32.totalorder %s24, %s25
    %p39 = scmp.eq.s32.totalorder %s17, 1
    %p40 = por %p38, %p39
    %p42 = scmp.ne.s32.totalorder %s25, %s41
    %p43 = scmp.eq.s32.totalorder %s17, 0
    %p44 = por %p42, %p43
    %s46 = sadd.s32 %s45, 1
    %p49 = scmp.eq.s32.totalorder %s11, 1
    %p50 = scmp.ne.s32.totalorder %s45, %s47
    %p51 = scmp.eq.s32.totalorder %s11, 0
    %p52 = por %p50, %p51
    %p53 = scmp.ne.s32.totalorder %s45, %s47
    %p54 = scmp.eq.s32.totalorder %s16, 1
    %p55 = por %p53, %p54
    %p56 = scmp.ne.s32.totalorder %s47, %s48
    %p57 = scmp.eq.s32.totalorder %s16, 0
    %p58 = por %p56, %p57
    %p59 = scmp.ne.s32.totalorder %s47, %s48
    %p60 = scmp.eq.s32.totalorder %s17, 1
    %p61 = por %p59, %p60
    %p63 = scmp.ne.s32.totalorder %s48, %s62
    %p64 = scmp.eq.s32.totalorder %s17, 0
    %p65 = por %p63, %p64
    %s67 = sadd.s32 %s66, 1
    %p70 = scmp.eq.s32.totalorder %s11, 1
    %p71 = scmp.ne.s32.totalorder %s66, %s68
    %p72 = scmp.eq.s32.totalorder %s11, 0
    %p73 = por %p71, %p72
    %p74 = scmp.ne.s32.totalorder %s66, %s68
    %p75 = scmp.eq.s32.totalorder %s16, 1
    %p76 = por %p74, %p75
    %p77 = scmp.ne.s32.totalorder %s68, %s69
    %p78 = scmp.eq.s32.totalorder %s16, 0
    %p79 = por %p77, %p78
    %p80 = scmp.ne.s32.totalorder %s68, %s69
    %p81 = scmp.eq.s32.totalorder %s17, 1
    %p82 = por %p80, %p81
    %p84 = scmp.ne.s32.totalorder %s69, %s83
    %p85 = scmp.eq.s32.totalorder %s17, 0
    %p86 = por %p84, %p85
    %s88 = sadd.s32 %s87, 1
    %p91 = scmp.eq.s32.totalorder %s11, 1
    %p92 = scmp.ne.s32.totalorder %s87, %s89
    %p93 = scmp.eq.s32.totalorder %s11, 0
    %p94 = por %p92, %p93
    %p95 = scmp.ne.s32.totalorder %s87, %s89
    %p96 = scmp.eq.s32.totalorder %s16, 1
    %p97 = por %p95, %p96
    %p98 = scmp.ne.s32.totalorder %s89, %s90
    %p99 = scmp.eq.s32.totalorder %s16, 0
    %p100 = por %p98, %p99
    %p101 = scmp.ne.s32.totalorder %s89, %s90
    %p102 = scmp.eq.s32.totalorder %s17, 1
    %p103 = por %p101, %p102
    %p105 = scmp.ne.s32.totalorder %s90, %s104
    %p106 = scmp.eq.s32.totalorder %s17, 0
    %p107 = por %p105, %p106
    %s109 = sadd.s32 %s108, 1
    %p112 = scmp.eq.s32.totalorder %s11, 1
    %p113 = scmp.ne.s32.totalorder %s108, %s110
    %p114 = scmp.eq.s32.totalorder %s11, 0
    %p115 = por %p113, %p114
    %p116 = scmp.ne.s32.totalorder %s108, %s110
    %p117 = scmp.eq.s32.totalorder %s16, 1
    %p118 = por %p116, %p117
    %p119 = scmp.ne.s32.totalorder %s110, %s111
    %p120 = scmp.eq.s32.totalorder %s16, 0
    %p121 = por %p119, %p120
    %p122 = scmp.ne.s32.totalorder %s110, %s111
    %p123 = scmp.eq.s32.totalorder %s17, 1
    %p124 = por %p122, %p123
    %p126 = scmp.ne.s32.totalorder %s111, %s125
    %p127 = scmp.eq.s32.totalorder %s17, 0
    %p128 = por %p126, %p127
    %s129 = ssub.s32 %s11, %s18
    %p130 = scmp.eq.s32.totalorder %s129, 0
    %s132 = sadd.s32 %s131, 1
    %s133 = scalar_select %p130, %s131, %s132
    %p136 = pneg %p130
    %p137 = scmp.eq.s32.totalorder %s11, 1
    %p138 = por %p136, %p137
    %p139 = scmp.ne.s32.totalorder %s131, %s134
    %p140 = scmp.eq.s32.totalorder %s11, 0
    %p141 = por %p139, %p140
    %p142 = scmp.ne.s32.totalorder %s131, %s134
    %p143 = scmp.eq.s32.totalorder %s16, 1
    %p144 = por %p142, %p143
    %p145 = scmp.ne.s32.totalorder %s134, %s135
    %p146 = scmp.eq.s32.totalorder %s16, 0
    %p147 = por %p145, %p146
    %p148 = scmp.ne.s32.totalorder %s134, %s135
    %p149 = scmp.eq.s32.totalorder %s17, 1
    %p150 = por %p148, %p149
    %p152 = scmp.ne.s32.totalorder %s135, %s151
    %p153 = scmp.eq.s32.totalorder %s17, 0
    %p154 = por %p152, %p153
    %p155 = scmp.le.s32.totalorder 1, %s11
    %p156 = scmp.lt.s32.totalorder %s11, 3
    %p157 = pnand %p155, %p156
    %p158 = pneg %p157
    // Predicated region
    $region9: #{position_wise_ffn.1} parent=5 // pred_check
      _
    $region10: #{position_wise_ffn.1} parent=5 // pred_check_branch
      %160 = sbr.rel (%p157) target = $region12
    $region11: #{position_wise_ffn.1} parent=5 // pred_region
      %s161 = ssub.s32 %s11, 1
      // Predicated region
      $region13: #{position_wise_ffn.1} parent=11 // pred_check
        %p162 = pneg %p58
      $region14: #{position_wise_ffn.1} parent=11 // pred_check_branch
        %164 = sbr.rel (%p162) target = $region16
      $region15: #{position_wise_ffn.1} parent=11 // pred_region
        _
      $region16: #{position_wise_ffn.1} parent=11 // pred_fallthru
        _
      // Predicated region
      $region17: #{position_wise_ffn.1} parent=11 // pred_check
        %p165 = pneg %p79
      $region18: #{position_wise_ffn.1} parent=11 // pred_check_branch
        %167 = sbr.rel (%p165) target = $region20
      $region19: #{position_wise_ffn.1} parent=11 // pred_region
        _
      $region20: #{position_wise_ffn.1} parent=11 // pred_fallthru
        _
      // Predicated region
      $region21: #{position_wise_ffn.1} parent=11 // pred_check
        %p168 = pneg %p100
      $region22: #{position_wise_ffn.1} parent=11 // pred_check_branch
        %170 = sbr.rel (%p168) target = $region24
      $region23: #{position_wise_ffn.1} parent=11 // pred_region
        _
      $region24: #{position_wise_ffn.1} parent=11 // pred_fallthru
        _
      // Predicated region
      $region25: #{position_wise_ffn.1} parent=11 // pred_check
        %p171 = pneg %p121
      $region26: #{position_wise_ffn.1} parent=11 // pred_check_branch
        %173 = sbr.rel (%p171) target = $region28
      $region27: #{position_wise_ffn.1} parent=11 // pred_region
        _
      $region28: #{position_wise_ffn.1} parent=11 // pred_fallthru
        _
    $region12: #{position_wise_ffn.1} parent=5 // pred_fallthru
      _
    %p174 = scmp.lt.s32.totalorder %s11, 2
    // Predicated region
    $region29: #{position_wise_ffn.1} parent=5 // pred_check
      %p175 = pneg %p174
    $region30: #{position_wise_ffn.1} parent=5 // pred_check_branch
      %177 = sbr.rel (%p175) target = $region32
    $region31: #{position_wise_ffn.1} parent=5 // pred_region
      // Predicated region
      $region33: #{position_wise_ffn.1} parent=31 // pred_check
        %p178 = pneg %p31
      $region34: #{position_wise_ffn.1} parent=31 // pred_check_branch
        %180 = sbr.rel (%p178) target = $region36
      $region35: #{position_wise_ffn.1} parent=31 // pred_region
        %p181 = scmp.lt.s32.totalorder %s11, 1
        %s182 = scalar_select %p181, %s11, 1
        %s183 = smul.addr %s182, 8
        %s184 = scalar_lea.vmem %s0, %s183
      $region36: #{position_wise_ffn.1} parent=31 // pred_fallthru
        _
    $region32: #{position_wise_ffn.1} parent=5 // pred_fallthru
      _
    %p185 = scmp.le.s32.totalorder 1, %s11
    %p186 = scmp.lt.s32.totalorder %s11, 3
    %p187 = pnand %p185, %p186
    %p188 = pneg %p187
    // Predicated region
    $region37: #{position_wise_ffn.1} parent=5 // pred_check
      _
    $region38: #{position_wise_ffn.1} parent=5 // pred_check_branch
      %190 = sbr.rel (%p187) target = $region40
    $region39: #{position_wise_ffn.1} parent=5 // pred_region
      %s191 = ssub.s32 %s11, 1
      %p192 = scmp.lt.s32.totalorder %s16, 1
      %s193 = scalar_select %p192, %s16, 1
      %s194 = smul.addr %s193, 8
      %s195 = scalar_lea.vmem %s0, %s194
      %p196 = pneg %p37
      %p197 = pneg %p34
      %p198 = pneg %p58
      %p199 = pneg %p55
      %p200 = pneg %p79
      %p201 = pneg %p76
      %p202 = pneg %p100
      %p203 = pneg %p97
      %p204 = pneg %p121
      %p205 = pneg %p118
      %p206 = pneg %p147
      %p207 = pneg %p144
      %p208 = scmp.lt.s32.totalorder %s16, 1
      %s209 = scalar_select %p208, %s16, 1
      %s210 = smul.addr %s209, 8
      %s211 = scalar_lea.vmem %s5, %s210
      %p212 = scmp.lt.s32.totalorder %s16, 1
      %s213 = scalar_select %p212, %s16, 1
      %s214 = smul.addr %s213, 8
      %s215 = scalar_lea.vmem %s0, %s214
      %p216 = scmp.lt.s32.totalorder %s16, 1
      %s217 = scalar_select %p216, %s16, 1
      %s218 = smul.addr %s217, 8
      %s219 = scalar_lea.vmem %s5, %s218
      %v221 = vld [vmem:[%s215] sm:$0xff]
      %v222 = vpack.c.bf16 %v221, %v221
      %v223 = vld [vmem:[%s1] sm:$0xf]
      %v224 = vld [vmem:[%s1 + $0x4] sm:$0xf]
      %v225 = vld [vmem:[%s1 + $0x8] sm:$0xf]
      %v226 = vld [vmem:[%s1 + $0xc] sm:$0xf]
      %v227 = vld [vmem:[%s2] sm:$0x1]
      %v229 = vlaneseq
      %v230 = vshrl.u32 %v229, 7
      %v231 = vsub.s32 0, %v230
      %v232 = vrot.slane %v227, %v231
      %v238 = vunpack.c.l.b16 %v223
      %v239 = vunpack.c.l.b16 %v224
      %v240 = vunpack.c.l.b16 %v225
      %v241 = vunpack.c.l.b16 %v226
      %v242 = vpack.c.b16 %v239, %v238
      %v243 = vpack.c.b16 %v241, %v240
      %vm246 = vcmask 261120
      %v248 = vsel %vm246, %v222, 0
      %250 = vmatprep.subr.bf16.mxu0 0
      %251 = vmatpush1.bf16.msra.mxu0 %v242
      %252 = vmatprep.subr.bf16.mxu0 0
      %253 = vmatpush1.bf16.msra.mxu0 %v243
      %254 = vmatprep.subr.bf16.mxu0 0
      %255 = vmatpush1.bf16.msra.mxu0 0
      %256 = vmatprep.subr.bf16.mxu0 0
      %257 = vmatpush1.bf16.msra.mxu0 0
      %258 = vmatprep.subr.bf16.mxu0 0
      %259 = vmatpush1.bf16.msra.mxu0 0
      %260 = vmatprep.subr.bf16.mxu0 0
      %261 = vmatpush1.bf16.msra.mxu0 0
      %262 = vmatprep.subr.bf16.mxu0 0
      %263 = vmatpush1.bf16.msra.mxu0 0
      %264 = vmatprep.subr.bf16.mxu0 0
      %265 = vmatpush1.bf16.msra.mxu0 0
      %266 = vmatprep.subr.bf16.mxu0 0
      %267 = vmatpush1.bf16.msra.mxu0 0
      %268 = vmatprep.subr.bf16.mxu0 0
      %269 = vmatpush1.bf16.msra.mxu0 0
      %270 = vmatprep.subr.bf16.mxu0 0
      %271 = vmatpush1.bf16.msra.mxu0 0
      %272 = vmatprep.subr.bf16.mxu0 0
      %273 = vmatpush1.bf16.msra.mxu0 0
      %274 = vmatprep.subr.bf16.mxu0 0
      %275 = vmatpush1.bf16.msra.mxu0 0
      %276 = vmatprep.subr.bf16.mxu0 0
      %277 = vmatpush1.bf16.msra.mxu0 0
      %278 = vmatprep.subr.bf16.mxu0 0
      %279 = vmatpush1.bf16.msra.mxu0 0
      %280 = vmatprep.subr.bf16.mxu0 0
      %281 = vmatpush1.bf16.msra.mxu0 0
      %282 = vmatprep.mubr.bf16.mxu0 0
      %283 = vmatmul.mubr.bf16.gmra.mrb[0].mxu0 %v248
      %v284 = vpop.f32.mrb[0].mxu0
      %v285 = vadd.f32 %v232, %v284
      %v286 = vpop.f32.mrb[0].mxu0
      %v287 = vpop.f32.mrb[0].mxu0
      %v288 = vpop.f32.mrb[0].mxu0
      %289 = vdwg.mxu0
      %v290 = vmax.f32 %v285, 0.0
      %v291 = vpack.c.bf16 %v290, %v290
      %v292 = vld [vmem:[%s3] sm:$0xf]
      %v293 = vld [vmem:[%s3 + $0x4] sm:$0xf]
      %v294 = vld [vmem:[%s3 + $0x8] sm:$0xf]
      %v295 = vld [vmem:[%s3 + $0xc] sm:$0xf]
      %v296 = vld [vmem:[%s3 + $0x10] sm:$0xf]
      %v297 = vld [vmem:[%s3 + $0x14] sm:$0xf]
      %v298 = vld [vmem:[%s3 + $0x18] sm:$0xf]
      %v299 = vld [vmem:[%s3 + $0x1c] sm:$0xf]
      %v300 = vld [vmem:[%s4] sm:$0x1]
      %v302 = vlaneseq
      %v303 = vshrl.u32 %v302, 7
      %v304 = vsub.s32 0, %v303
      %v305 = vrot.slane %v300, %v304
      %v315 = vunpack.c.l.b16 %v292
      %v316 = vunpack.c.l.b16 %v293
      %v317 = vunpack.c.l.b16 %v294
      %v318 = vunpack.c.l.b16 %v295
      %v319 = vunpack.c.l.b16 %v296
      %v320 = vunpack.c.l.b16 %v297
      %v321 = vunpack.c.l.b16 %v298
      %v322 = vunpack.c.l.b16 %v299
      %v323 = vpack.c.b16 %v316, %v315
      %v324 = vpack.c.b16 %v318, %v317
      %v325 = vpack.c.b16 %v320, %v319
      %v326 = vpack.c.b16 %v322, %v321
      %vm331 = vcmask 523264
      %v333 = vsel %vm331, %v291, 0
      %335 = vmatprep.subr.bf16.mxu0 0
      %336 = vmatpush1.bf16.msra.mxu0 %v323
      %337 = vmatprep.subr.bf16.mxu0 0
      %338 = vmatpush1.bf16.msra.mxu0 %v324
      %339 = vmatprep.subr.bf16.mxu0 0
      %340 = vmatpush1.bf16.msra.mxu0 %v325
      %341 = vmatprep.subr.bf16.mxu0 0
      %342 = vmatpush1.bf16.msra.mxu0 %v326
      %343 = vmatprep.subr.bf16.mxu0 0
      %344 = vmatpush1.bf16.msra.mxu0 0
      %345 = vmatprep.subr.bf16.mxu0 0
      %346 = vmatpush1.bf16.msra.mxu0 0
      %347 = vmatprep.subr.bf16.mxu0 0
      %348 = vmatpush1.bf16.msra.mxu0 0
      %349 = vmatprep.subr.bf16.mxu0 0
      %350 = vmatpush1.bf16.msra.mxu0 0
      %351 = vmatprep.subr.bf16.mxu0 0
      %352 = vmatpush1.bf16.msra.mxu0 0
      %353 = vmatprep.subr.bf16.mxu0 0
      %354 = vmatpush1.bf16.msra.mxu0 0
      %355 = vmatprep.subr.bf16.mxu0 0
      %356 = vmatpush1.bf16.msra.mxu0 0
      %357 = vmatprep.subr.bf16.mxu0 0
      %358 = vmatpush1.bf16.msra.mxu0 0
      %359 = vmatprep.subr.bf16.mxu0 0
      %360 = vmatpush1.bf16.msra.mxu0 0
      %361 = vmatprep.subr.bf16.mxu0 0
      %362 = vmatpush1.bf16.msra.mxu0 0
      %363 = vmatprep.subr.bf16.mxu0 0
      %364 = vmatpush1.bf16.msra.mxu0 0
      %365 = vmatprep.subr.bf16.mxu0 0
      %366 = vmatpush1.bf16.msra.mxu0 0
      %367 = vmatprep.mubr.bf16.mxu0 0
      %368 = vmatmul.mubr.bf16.gmra.mrb[0].mxu0 %v333
      %v369 = vpop.f32.mrb[0].mxu0
      %v370 = vadd.f32 %v305, %v369
      %v371 = vpop.f32.mrb[0].mxu0
      %v372 = vpop.f32.mrb[0].mxu0
      %v373 = vpop.f32.mrb[0].mxu0
      %374 = vdwg.mxu0
      %375 = vst [vmem:[%s219] sm:$0xff] %v370
      %p376 = scmp.lt.s32.totalorder %s16, 1
      %s377 = scalar_select %p376, %s16, 1
      %s378 = smul.addr %s377, 8
      %s379 = scalar_lea.vmem %s5, %s378
      // Predicated region
      $region41: #{position_wise_ffn.1} parent=39 // pred_check
        %p380 = pneg %p144
      $region42: #{position_wise_ffn.1} parent=39 // pred_check_branch
        %382 = sbr.rel (%p380) target = $region44
      $region43: #{position_wise_ffn.1} parent=39 // pred_region
        _
      $region44: #{position_wise_ffn.1} parent=39 // pred_fallthru
        _
    $region40: #{position_wise_ffn.1} parent=5 // pred_fallthru
      _
    %p383 = scmp.le.s32.totalorder 2, %s11
    // Predicated region
    $region45: #{position_wise_ffn.1} parent=5 // pred_check
      %p384 = pneg %p383
    $region46: #{position_wise_ffn.1} parent=5 // pred_check_branch
      %386 = sbr.rel (%p384) target = $region48
    $region47: #{position_wise_ffn.1} parent=5 // pred_region
      %s387 = ssub.s32 %s11, 2
      // Predicated region
      $region49: #{position_wise_ffn.1} parent=47 // pred_check
        %p388 = pneg %p150
      $region50: #{position_wise_ffn.1} parent=47 // pred_check_branch
        %390 = sbr.rel (%p388) target = $region52
      $region51: #{position_wise_ffn.1} parent=47 // pred_region
        %p391 = scmp.lt.s32.totalorder %s17, 1
        %s392 = scalar_select %p391, %s17, 1
        %s393 = smul.addr %s392, 8
        %s394 = scalar_lea.vmem %s5, %s393
      $region52: #{position_wise_ffn.1} parent=47 // pred_fallthru
        _
    $region48: #{position_wise_ffn.1} parent=5 // pred_fallthru
      _
  $region6: #{position_wise_ffn.1} parent=0 // loop_footer
    %s15 = sadd.s32 1, %s11
  $region7: #{position_wise_ffn.1} parent=0 // loop_footer_branch
    %10 = sbr.rel target = $region3
  $region8: #{position_wise_ffn.1} parent=0 // loop_exit
    _

</llo_original>
